<compile_context>
chip_gen: v7x
topology: tpu7x:2x2x1
jax: 0.10.0
libtpu: 0.0.40
codegen_flags: <defaults>
</compile_context>

<pallas_src>
import functools

import jax
import jax.numpy as jnp
from jax import lax
from jax.experimental import pallas as pl
from jax.experimental.pallas import tpu as pltpu

_VMEM = functools.partial(pl.BlockSpec, memory_space=pltpu.MemorySpace.VMEM)

WLST = ['sigmoid', 'sigmoid', 'sigmoid', 'sigmoid', 'exp', 'relu', 'skip']
VLST = ['skip', 'relu', 'exp']


def _bf16_dot(a, b):
    """bf16 x bf16 -> f32 matmul (native MXU path)."""
    return jnp.dot(a.astype(jnp.bfloat16), b.astype(jnp.bfloat16),
                   preferred_element_type=jnp.float32)


# ---------------------------------------------------------------------------
# Generation-aware VMEM sizing.
# ---------------------------------------------------------------------------
def _tpu_vmem_caps():
    """Returns (vmem_limit_bytes, site_block_budget_bytes, min_site_blocks)."""
    cap = 64 * 1024 * 1024                      # conservative default (v7x)
    try:
        info = pltpu.get_tpu_info()
        c = getattr(info, "vmem_capacity_bytes", None)
        if c:
            cap = int(c)
    except Exception:
        pass
    if cap <= 80 * 1024 * 1024:                 # v7x-class: 64 MiB per TC
        # lower scoped limit + force >=2 site blocks so both TCs get work
        return 44 * 1024 * 1024, 28 * 1024 * 1024, 2
    # v5e / v6e: 128 MiB physical -> use most of it (bigger site blocks)
    return 96 * 1024 * 1024, 64 * 1024 * 1024, 1


def _pick_site_block(ns, nt, nh, nr, budget_bytes, min_blocks=1):
    """Lane-dense site block: multiple of 128 (cdiv gridding + padding) unless
    the whole problem is small enough for a single full-width block."""
    per_site = (2 * (28 * nt + 1024 + 24 * nh + 4 * nr * nh)   # dbl-buffered blocks
                + 4096 + 48 * nh + 8 * nr * nh)                # working temps
    cap = budget_bytes // max(per_site, 1)
    if min_blocks > 1 and ns >= 256:            # v7x: keep both TCs busy
        cap = min(cap, pl.cdiv(ns, min_blocks))
    if ns <= 128 or cap >= ns:
        return ns, ns                           # single block == full array dim
    nsb = max(128, (cap // 128) * 128)          # multiple-of-128 lane width
    nsb = min(nsb, ns)
    ns_pad = nsb * pl.cdiv(ns, nsb)
    return nsb, ns_pad


# ---------------------------------------------------------------------------
# Kernel 1: fcW + fcR merged (two tiny 2-layer MLPs on the attributes [ns,ng]).
# ---------------------------------------------------------------------------
def _gates_kernel(xc_ref, w1w_ref, b1w_ref, w2w_ref, b2w_ref,
                  w1r_ref, b1r_ref, w2r_ref, b2r_ref, ow_ref, or_ref):
    xcb = xc_ref[...].astype(jnp.bfloat16)
    hw = jnp.tanh(jnp.dot(xcb, w1w_ref[...],
                          preferred_element_type=jnp.float32) + b1w_ref[...])
    ow_ref[...] = (jnp.dot(hw.astype(jnp.bfloat16), w2w_ref[...],
                           preferred_element_type=jnp.float32) + b2w_ref[...])
    hr = jnp.tanh(jnp.dot(xcb, w1r_ref[...],
                          preferred_element_type=jnp.float32) + b1r_ref[...])
    or_ref[...] = (jnp.dot(hr.astype(jnp.bfloat16), w2r_ref[...],
                           preferred_element_type=jnp.float32) + b2r_ref[...])


def gates_mlp(xc, fcw, fcr):
    ns = xc.shape[0]
    w1w, b1w, w2w, b2w = fcw
    w1r, b1r, w2r, b2r = fcr
    return pl.pallas_call(
        _gates_kernel,
        out_shape=(jax.ShapeDtypeStruct((ns, w2w.shape[1]), jnp.float32),
                   jax.ShapeDtypeStruct((ns, w2r.shape[1]), jnp.float32)),
        in_specs=[_VMEM()] * 9,
        out_specs=(_VMEM(), _VMEM()),
    )(xc,
      w1w.astype(jnp.bfloat16), b1w.reshape(1, -1),
      w2w.astype(jnp.bfloat16), b2w.reshape(1, -1),
      w1r.astype(jnp.bfloat16), b1r.reshape(1, -1),
      w2r.astype(jnp.bfloat16), b2r.reshape(1, -1))


# ---------------------------------------------------------------------------
# Kernel 2: fully fused fcT (per-step MLP) + bucket recurrence (forwardStepQ)
#           + routing FIR (convTS * ga).  Site axis on lanes, nh on sublanes.
#           Neither v[k] nor Q[k] ever touches HBM.
# ---------------------------------------------------------------------------
def _fused_kernel(met_ref, x_ref, sb_ref, w1_ref, w2_ref, b2_ref,
                  g_ref, rf_ref, y_ref):
    # met_ref : (nt, 3, nsb)   f32   rows [Ps, P*(1-vf), E]
    # x_ref   : (nt, 6, nsb)   bf16  forcings, channel-major
    # sb_ref  : (dh, nsb)      f32   per-site bias (xc @ W1[6:] + b1).T
    # w1_ref  : (dh, 6)        bf16  W1[:6].T
    # w2_ref  : (3nh, dh)      bf16  W2.T
    # b2_ref  : (3nh, 1)       f32
    # g_ref   : (6, nh, nsb)   f32   [kp, ks, kg, gp, gL, qb]
    # rf_ref  : (nr, nh, nsb)  f32   routing kernel with ga folded in
    # y_ref   : (nc, tb, nsb)  f32   yfull; rows < nr-1 are partials (dropped)
    _, nh, nsb = g_ref.shape
    nr = rf_ref.shape[0]
    nc, tb = y_ref.shape[0], y_ref.shape[1]

    g = g_ref[...]
    kp, ks, kg, gp, gL, qb = (g[i] for i in range(6))
    rf = rf_ref[...]
    sb = sb_ref[...]
    w1 = w1_ref[...]
    w2 = w2_ref[...]
    b2 = b2_ref[...]

    zst = jnp.zeros((nh, nsb), jnp.float32)
    zfir = jnp.zeros((nr, nsb), jnp.float32)
    zrow = jnp.zeros((1, nsb), jnp.float32)

    def chunk(c, carry):
        Sf, Ss, Sg, pbuf = carry
        base = pl.multiple_of(c * tb, tb)
        rows = []
        for t in range(tb):                       # static unroll in the chunk
            k = base + t
            xt = x_ref[k]                                         # (6, nsb)
            mt = met_ref[k]                                       # (3, nsb)
            fs, fla, fe = mt[0:1], mt[1:2], mt[2:3]
            # ---- fcT fused: two small matmuls on the otherwise-idle MXU ----
            h = jnp.tanh(jnp.dot(w1, xt, preferred_element_type=jnp.float32)
                         + sb)                                    # (dh, nsb)
            raw = jnp.dot(w2, h.astype(jnp.bfloat16),
                          preferred_element_type=jnp.float32) + b2  # (3nh,nsb)
            vi = jnp.clip(raw[0:nh] / 3.0 + 0.5, 0.0, 1.0)  # hardsigmoid(2x)
            ve = 2.0 * jnp.maximum(raw[nh:2 * nh], 0.0)     # 2 * relu
            fm = jnp.exp(raw[2 * nh:3 * nh])                # vm
            fl = fla * vi                                   # Pl
            fev = fe * ve                                   # Ev
            # ---- forwardStepQ -------------------------------------------
            qf = jnp.minimum(Sf + fs, fm)
            Sf = jnp.maximum(Sf + fs - fm, 0.0)
            H = jnp.maximum(Ss + fl + qf - fev, 0.0)
            qp = jnp.maximum(kp * (H - gL), 0.0)
            qsa = ks * jnp.minimum(H, gL)
            Ss = H - qp - qsa
            qsg = qsa * gp
            qs = qsa * (1.0 - gp)
            qg = kg * (Sg + qsg) + qb
            Sg = (1.0 - kg) * (Sg + qsg) - qb
            Q = qp + qs + qg                                      # (nh, nsb)
            # ---- routing FIR: contract over nh first, tiny (nr,nsb) carry --
            cfir = jnp.sum(rf * Q[None], axis=1)                  # (nr, nsb)
            if nr == 1:
                pbuf = cfir
            else:
                pbuf = jnp.concatenate([zrow, pbuf[:nr - 1]], axis=0) + cfir
            rows.append(pbuf[nr - 1:nr])                          # (1, nsb)
        y_ref[c] = jnp.concatenate(rows, axis=0)                  # one store
        return Sf, Ss, Sg, pbuf

    lax.fori_loop(0, nc, chunk, (zst, zst, zst, zfir))


def fused_forward(met, x6, sbT, w1xT, w2T, b2c, gates, rfg, nh, nr):
    nt, _, ns = met.shape
    dh = sbT.shape[0]
    nh3 = w2T.shape[0]
    vmem_limit, budget, min_blocks = _tpu_vmem_caps()
    nsb, ns_pad = _pick_site_block(ns, nt, nh, nr, budget, min_blocks)
    if ns_pad != ns:
        pad = ns_pad - ns
        padlast = lambda a: jnp.pad(a, [(0, 0)] * (a.ndim - 1) + [(0, pad)])
        met, x6, sbT, gates, rfg = map(padlast, (met, x6, sbT, gates, rfg))
    tb = max(t for t in (8, 4, 2, 1) if nt % t == 0)
    nc = nt // tb

    y3 = pl.pallas_call(
        _fused_kernel,
        out_shape=jax.ShapeDtypeStruct((nc, tb, ns_pad), jnp.float32),
        grid=(ns_pad // nsb,),
        in_specs=[
            pl.BlockSpec((nt, 3, nsb), lambda i: (0, 0, i)),
            pl.BlockSpec((nt, 6, nsb), lambda i: (0, 0, i)),
            pl.BlockSpec((dh, nsb), lambda i: (0, i)),
            pl.BlockSpec((dh, 6), lambda i: (0, 0)),
            pl.BlockSpec((nh3, dh), lambda i: (0, 0)),
            pl.BlockSpec((nh3, 1), lambda i: (0, 0)),
            pl.BlockSpec((6, nh, nsb), lambda i: (0, 0, i)),
            pl.BlockSpec((nr, nh, nsb), lambda i: (0, 0, i)),
        ],
        out_specs=pl.BlockSpec((nc, tb, nsb), lambda i: (0, 0, i)),
        compiler_params=pltpu.CompilerParams(
            dimension_semantics=("parallel",),
            vmem_limit_bytes=vmem_limit),
    )(met, x6, sbT, w1xT, w2T, b2c, gates, rfg)

    # rows 0 .. nr-2 hold partial FIR sums; drop them (and any site padding).
    return y3.reshape(nt, ns_pad)[nr - 1:, :ns]


# ---------------------------------------------------------------------------
# JAX glue: parameter split / small per-site math / forwardPreQ scalars
# ---------------------------------------------------------------------------
def sep_par(p, nh, lst):
    out = []
    for k, name in enumerate(lst):
        pp = p[..., nh * k:nh * (k + 1)]
        if name == 'sigmoid':
            pp = jax.nn.sigmoid(pp)
        elif name == 'relu':
            pp = jax.nn.relu(pp)
        elif name == 'exp':
            pp = jnp.exp(pp)
        out.append(pp)
    return out


def init_params(key, nh, ng, nr):
    def linear(k, din, dout):
        k1, k2 = jax.random.split(k)
        bound = 1.0 / float(din) ** 0.5
        w = jax.random.uniform(k1, (din, dout), jnp.float32, -bound, bound)
        b = jax.random.uniform(k2, (dout,), jnp.float32, -bound, bound)
        return w, b

    kk = jax.random.split(key, 6)
    return {
        'fcR': (*linear(kk[0], ng, 256), *linear(kk[1], 256, nh * nr)),
        'fcW': (*linear(kk[2], ng, 256), *linear(kk[3], 256, nh * 7)),
        'fcT': (*linear(kk[4], 6 + ng, 256), *linear(kk[5], 256, nh * 3)),
    }


def forward(params, x, xc, nh, nr):
    """Optimized Pallas forward (eval mode)."""
    nt, ns, _ = x.shape
    P, E, T1, T2 = x[..., 0], x[..., 1], x[..., 2], x[..., 3]
    # R = x[..., 4], LAI = x[..., 5] are unpacked but unused in the torch forward.

    # ---- fcW + fcR in one tiny Pallas call --------------------------------
    w, wr = gates_mlp(xc, params['fcW'], params['fcR'])
    kp, ks, kg, gp, gL, qb, ga = sep_par(w, nh, WLST)
    gL = gL ** 2
    kg = kg / 10.0
    ga = jax.nn.softmax(ga, axis=-1)
    gates = jnp.stack([kp.T, ks.T, kg.T, gp.T, gL.T, qb.T], axis=0)  # (6,nh,ns)

    rf = jax.nn.relu(wr)                                          # (ns, nh*nr)
    rf = jnp.transpose(rf.reshape(ns, nh, nr), (2, 0, 1))         # (nr, ns, nh)
    rfg = jnp.transpose(rf * ga[None], (0, 2, 1))                 # (nr, nh, ns)

    # ---- fcT, split first layer (no xcT = concat(x, tile(xc))) ------------
    w1, b1, w2, b2 = params['fcT']
    sbT = (_bf16_dot(xc, w1[6:]) + b1).T                          # (256, ns)
    x6 = jnp.transpose(x, (0, 2, 1)).astype(jnp.bfloat16)         # (nt, 6, ns)

    # ---- forwardPreQ snow/rain split (small [nt, ns] arrays) --------------
    denom = T2 - T1                       # guard T1 == T2 (result is masked)
    arg = jnp.clip((T1 + T2) / jnp.where(denom == 0.0, 1.0, denom), -1.0, 1.0)
    vf = jnp.arccos(arg) / 3.1415
    vf = jnp.where(T1 >= 0, 0.0, vf)
    vf = jnp.where(T2 <= 0, 1.0, vf)
    met = jnp.stack([P * vf, P * (1.0 - vf), E], axis=1)          # (nt, 3, ns)

    # ---- fused fcT + bucket recurrence + routing FIR ------------------------
    return fused_forward(met, x6, sbT,
                         w1[:6].T.astype(jnp.bfloat16),
                         w2.T.astype(jnp.bfloat16),
                         b2.reshape(-1, 1),
                         gates, rfg, nh, nr)                      # (nto, ns)


# ---------------------------------------------------------------------------
# Pure-JAX reference mirroring the torch module (eval mode), same bf16 matmul
# precision as the kernels so the comparison isolates restructuring error.
# ---------------------------------------------------------------------------
def forward_ref(params, x, xc, nh, nr):
    nt, ns, _ = x.shape
    P, E, T1, T2 = x[..., 0], x[..., 1], x[..., 2], x[..., 3]

    def mlp(z, w1, b1, w2, b2):
        return _bf16_dot(jnp.tanh(_bf16_dot(z, w1) + b1), w2) + b2

    w = mlp(xc, *params['fcW'])
    kp, ks, kg, gp, gL, qb, ga = sep_par(w, nh, WLST)
    gL = gL ** 2
    kg = kg / 10.0
    ga = jax.nn.softmax(ga, axis=-1)

    xcT = jnp.concatenate([x, jnp.tile(xc[None], (nt, 1, 1))], axis=-1)
    v = mlp(xcT.reshape(nt * ns, -1), *params['fcT']).reshape(nt, ns, 3 * nh)
    vi, ve, vm = sep_par(v, nh, VLST)
    vi = jax.nn.hard_sigmoid(vi * 2.0)
    ve = ve * 2.0

    rf = jax.nn.relu(mlp(xc, *params['fcR']))
    rf = jnp.transpose(rf.reshape(ns, nh, nr), (2, 0, 1))         # (nr, ns, nh)

    arg = jnp.clip((T1 + T2) / (T2 - T1), -1.0, 1.0)
    vf = jnp.arccos(arg) / 3.1415
    vf = jnp.where(T1 >= 0, 0.0, vf)
    vf = jnp.where(T2 <= 0, 1.0, vf)
    Ps = P * vf
    Pl = (P * (1.0 - vf))[:, :, None] * vi
    Ev = E[:, :, None] * ve

    def step(carry, inp):
        Sf, Ss, Sg = carry
        fs, fl, fev, fm = inp
        qf = jnp.minimum(Sf + fs, fm)
        Sf = jnp.maximum(Sf + fs - fm, 0.0)
        H = jnp.maximum(Ss + fl + qf - fev, 0.0)
        qp = jnp.maximum(kp * (H - gL), 0.0)
        qsa = ks * jnp.minimum(H, gL)
        Ss = H - qp - qsa
        qsg = qsa * gp
        qs = qsa * (1.0 - gp)
        qg = kg * (Sg + qsg) + qb
        Sg = (1.0 - kg) * (Sg + qsg) - qb
        return (Sf, Ss, Sg), (qp, qs, qg)

    init = tuple(jnp.zeros((ns, nh), jnp.float32) for _ in range(3))
    _, (QpT, QsT, QgT) = lax.scan(step, init, (Ps[:, :, None], Pl, Ev, vm))

    nto = nt - nr + 1

    def conv(q):
        return sum(q[r:r + nto] * rf[r][None] for r in range(nr))

    return jnp.sum((conv(QpT) + conv(QsT) + conv(QgT)) * ga[None], axis=2)


# ---------------------------------------------------------------------------
if __name__ == "__main__":
    nt, ns, nh, ng, nr = 24, 8, 16, 8, 4

    key = jax.random.PRNGKey(0)
    kparam, kdata, kxc = jax.random.split(key, 3)
    params = init_params(kparam, nh, ng, nr)

    kP, kE, kT, kS, kR, kL = jax.random.split(kdata, 6)
    P = jax.random.uniform(kP, (nt, ns), jnp.float32, 0.0, 10.0)
    E = jax.random.uniform(kE, (nt, ns), jnp.float32, 0.0, 5.0)
    Tm = jax.random.uniform(kT, (nt, ns), jnp.float32, -10.0, 20.0)
    Sp = jax.random.uniform(kS, (nt, ns), jnp.float32, 1.0, 8.0)
    T1, T2 = Tm - Sp, Tm + Sp                                     # T1 < T2
    R = jax.random.uniform(kR, (nt, ns), jnp.float32)
    LAI = jax.random.uniform(kL, (nt, ns), jnp.float32, 0.0, 6.0)
    x = jnp.stack([P, E, T1, T2, R, LAI], axis=-1)                # [nt, ns, 6]
    xc = jax.random.normal(kxc, (ns, ng), jnp.float32)            # [ns, ng]

    y = jax.block_until_ready(forward(params, x, xc, nh, nr))
    y_ref = jax.block_until_ready(forward_ref(params, x, xc, nh, nr))

    assert y.shape == (nt - nr + 1, ns), y.shape
    assert bool(jnp.all(jnp.isfinite(y)))
    err = float(jnp.max(jnp.abs(y - y_ref)))
    scale = float(jnp.max(jnp.abs(y_ref))) + 1.0
    assert err / scale < 1e-3, (err, scale)
    print("KERNEL_OK")
</pallas_src>

<mosaic_0001>
module attributes {stable_mosaic.version = 11 : i64} {
  func.func @_gates_kernel(%arg0: memref<8x8xf32, #tpu.memory_space<vmem>>, %arg1: memref<8x256xbf16, #tpu.memory_space<vmem>>, %arg2: memref<1x256xf32, #tpu.memory_space<vmem>>, %arg3: memref<256x112xbf16, #tpu.memory_space<vmem>>, %arg4: memref<1x112xf32, #tpu.memory_space<vmem>>, %arg5: memref<8x256xbf16, #tpu.memory_space<vmem>>, %arg6: memref<1x256xf32, #tpu.memory_space<vmem>>, %arg7: memref<256x64xbf16, #tpu.memory_space<vmem>>, %arg8: memref<1x64xf32, #tpu.memory_space<vmem>>, %arg9: memref<8x112xf32, #tpu.memory_space<vmem>>, %arg10: memref<8x64xf32, #tpu.memory_space<vmem>>) attributes {dimension_semantics = [], scalar_prefetch = 0 : i64, scratch_operands = 0 : i64, tpu.core_type = #tpu.core_type<tc>} {
    %c0 = arith.constant 0 : index
    %c0_0 = arith.constant 0 : index
    %0 = vector.load %arg0[%c0, %c0_0] : memref<8x8xf32, #tpu.memory_space<vmem>>, vector<8x8xf32>
    %1 = arith.truncf %0 : vector<8x8xf32> to vector<8x8xbf16>
    %c0_1 = arith.constant 0 : index
    %c0_2 = arith.constant 0 : index
    %2 = vector.load %arg1[%c0_1, %c0_2] : memref<8x256xbf16, #tpu.memory_space<vmem>>, vector<8x256xbf16>
    %cst = arith.constant dense<0.000000e+00> : vector<8x256xf32>
    %3 = tpu.matmul %1, %2, %cst {dimension_numbers = #tpu.dot_dimension_numbers<[1], [0], [0], [1], [0, 0, 1, 1], [], []>} : vector<8x8xbf16>, vector<8x256xbf16>, vector<8x256xf32> -> vector<8x256xf32>
    %c0_3 = arith.constant 0 : index
    %c0_4 = arith.constant 0 : index
    %4 = vector.load %arg2[%c0_3, %c0_4] : memref<1x256xf32, #tpu.memory_space<vmem>>, vector<1x256xf32>
    %5 = vector.broadcast %4 : vector<1x256xf32> to vector<8x256xf32>
    %6 = arith.addf %3, %5 : vector<8x256xf32>
    %7 = math.tanh %6 : vector<8x256xf32>
    %8 = arith.truncf %7 : vector<8x256xf32> to vector<8x256xbf16>
    %c0_5 = arith.constant 0 : index
    %c0_6 = arith.constant 0 : index
    %9 = vector.load %arg3[%c0_5, %c0_6] : memref<256x112xbf16, #tpu.memory_space<vmem>>, vector<256x112xbf16>
    %cst_7 = arith.constant dense<0.000000e+00> : vector<8x112xf32>
    %10 = tpu.matmul %8, %9, %cst_7 {dimension_numbers = #tpu.dot_dimension_numbers<[1], [0], [0], [1], [0, 0, 1, 1], [], []>} : vector<8x256xbf16>, vector<256x112xbf16>, vector<8x112xf32> -> vector<8x112xf32>
    %c0_8 = arith.constant 0 : index
    %c0_9 = arith.constant 0 : index
    %11 = vector.load %arg4[%c0_8, %c0_9] : memref<1x112xf32, #tpu.memory_space<vmem>>, vector<1x112xf32>
    %12 = vector.broadcast %11 : vector<1x112xf32> to vector<8x112xf32>
    %13 = arith.addf %10, %12 : vector<8x112xf32>
    %c0_10 = arith.constant 0 : index
    %c0_11 = arith.constant 0 : index
    %14 = vector.load %arg9[%c0_10, %c0_11] : memref<8x112xf32, #tpu.memory_space<vmem>>, vector<8x112xf32>
    tpu.vector_store %arg9[%c0_10, %c0_11], %13 {strides = array<i32>} : memref<8x112xf32, #tpu.memory_space<vmem>>, vector<8x112xf32>,
    %c0_12 = arith.constant 0 : index
    %c0_13 = arith.constant 0 : index
    %15 = vector.load %arg5[%c0_12, %c0_13] : memref<8x256xbf16, #tpu.memory_space<vmem>>, vector<8x256xbf16>
    %cst_14 = arith.constant dense<0.000000e+00> : vector<8x256xf32>
    %16 = tpu.matmul %1, %15, %cst_14 {dimension_numbers = #tpu.dot_dimension_numbers<[1], [0], [0], [1], [0, 0, 1, 1], [], []>} : vector<8x8xbf16>, vector<8x256xbf16>, vector<8x256xf32> -> vector<8x256xf32>
    %c0_15 = arith.constant 0 : index
    %c0_16 = arith.constant 0 : index
    %17 = vector.load %arg6[%c0_15, %c0_16] : memref<1x256xf32, #tpu.memory_space<vmem>>, vector<1x256xf32>
    %18 = vector.broadcast %17 : vector<1x256xf32> to vector<8x256xf32>
    %19 = arith.addf %16, %18 : vector<8x256xf32>
    %20 = math.tanh %19 : vector<8x256xf32>
    %21 = arith.truncf %20 : vector<8x256xf32> to vector<8x256xbf16>
    %c0_17 = arith.constant 0 : index
    %c0_18 = arith.constant 0 : index
    %22 = vector.load %arg7[%c0_17, %c0_18] : memref<256x64xbf16, #tpu.memory_space<vmem>>, vector<256x64xbf16>
    %cst_19 = arith.constant dense<0.000000e+00> : vector<8x64xf32>
    %23 = tpu.matmul %21, %22, %cst_19 {dimension_numbers = #tpu.dot_dimension_numbers<[1], [0], [0], [1], [0, 0, 1, 1], [], []>} : vector<8x256xbf16>, vector<256x64xbf16>, vector<8x64xf32> -> vector<8x64xf32>
    %c0_20 = arith.constant 0 : index
    %c0_21 = arith.constant 0 : index
    %24 = vector.load %arg8[%c0_20, %c0_21] : memref<1x64xf32, #tpu.memory_space<vmem>>, vector<1x64xf32>
    %25 = vector.broadcast %24 : vector<1x64xf32> to vector<8x64xf32>
    %26 = arith.addf %23, %25 : vector<8x64xf32>
    %c0_22 = arith.constant 0 : index
    %c0_23 = arith.constant 0 : index
    %27 = vector.load %arg10[%c0_22, %c0_23] : memref<8x64xf32, #tpu.memory_space<vmem>>, vector<8x64xf32>
    tpu.vector_store %arg10[%c0_22, %c0_23], %26 {strides = array<i32>} : memref<8x64xf32, #tpu.memory_space<vmem>>, vector<8x64xf32>,
    return
  }
}

</mosaic_0001>

<llo_original>
// kernel: tpu_custom_call.1
$region0: #{tpu_custom_call.1}
  #allocation0 [shape = 'u32[]', space=smem, size = 0x4, offset = 0x4, fixed_abs, tag = 'smem constant byte address 0x4 - core index']
  #allocation1 [shape = 'u32[144,128]{1,0:T(1,128)}', space=vmem, size = 0x12000, scoped, tag = 'internal scratch']
  %s0 = inlined_call_operand.vmem [shape: f32[8,8], index: 0, kind: input, shape index: {}]
  %s1 = inlined_call_operand.vmem [shape: bf16[8,256], index: 1, kind: input, shape index: {}]
  %s2 = inlined_call_operand.vmem [shape: f32[1,256], index: 2, kind: input, shape index: {}]
  %s3 = inlined_call_operand.vmem [shape: bf16[256,112], index: 3, kind: input, shape index: {}]
  %s4 = inlined_call_operand.vmem [shape: f32[1,112], index: 4, kind: input, shape index: {}]
  %s5 = inlined_call_operand.vmem [shape: bf16[8,256], index: 5, kind: input, shape index: {}]
  %s6 = inlined_call_operand.vmem [shape: f32[1,256], index: 6, kind: input, shape index: {}]
  %s7 = inlined_call_operand.vmem [shape: bf16[256,64], index: 7, kind: input, shape index: {}]
  %s8 = inlined_call_operand.vmem [shape: f32[1,64], index: 8, kind: input, shape index: {}]
  %s9 = inlined_call_operand.hbm [shape: f32[8,112], index: 9, kind: output, shape index: {0}]
  %s10 = inlined_call_operand.hbm [shape: f32[8,64], index: 10, kind: output, shape index: {1}]
  %11 = xla_tuple %s9, %s10
  %s12 = sld [smem:[#allocation0]]
  $region54: #{tpu_custom_call.1} parent=0
    _
  %s14 = ssub.s32 1, %s12
  %s15 = scalar_select 0, %s14, %s12
  $region1: #{tpu_custom_call.1} parent=0
    #allocation2 [shape = 'u8[4096]{0}', space=vmem, size = 0x1000, scoped, tag = 'output window, operand 0, single buffered']
    #allocation3 [shape = 's32[1]{0}', space=sflag, size = 0x4, scoped, tag = 'scoped memory for tpu_custom_call.1']
    #allocation4 [shape = 'u8[4096]{0}', space=vmem, size = 0x1000, scoped, tag = 'output window, operand 1, single buffered']
    #allocation5 [shape = 's32[1]{0}', space=sflag, size = 0x4, scoped, tag = 'scoped memory for tpu_custom_call.1']
    %16 = vsyncpa [#allocation3], 0
    %17 = vsyncpa [#allocation5], 0
    // Predicated region
    $region2: #{tpu_custom_call.1} parent=1 // pred_check
      _
    $region3: #{tpu_custom_call.1} parent=1 // pred_check_branch
      %19 = sbr.rel (0) target = $region5
    $region4: #{tpu_custom_call.1} parent=1 // pred_region
      _
    $region5: #{tpu_custom_call.1} parent=1 // pred_fallthru
      _
    // Predicated region
    $region6: #{tpu_custom_call.1} parent=1 // pred_check
      _
    $region7: #{tpu_custom_call.1} parent=1 // pred_check_branch
      %21 = sbr.rel (0) target = $region9
    $region8: #{tpu_custom_call.1} parent=1 // pred_region
      _
    $region9: #{tpu_custom_call.1} parent=1 // pred_fallthru
      _
    // Predicated region
    $region10: #{tpu_custom_call.1} parent=1 // pred_check
      _
    $region11: #{tpu_custom_call.1} parent=1 // pred_check_branch
      %23 = sbr.rel (0) target = $region13
    $region12: #{tpu_custom_call.1} parent=1 // pred_region
      _
    $region13: #{tpu_custom_call.1} parent=1 // pred_fallthru
      _
    // Predicated region
    $region14: #{tpu_custom_call.1} parent=1 // pred_check
      _
    $region15: #{tpu_custom_call.1} parent=1 // pred_check_branch
      %25 = sbr.rel (0) target = $region17
    $region16: #{tpu_custom_call.1} parent=1 // pred_region
      _
    $region17: #{tpu_custom_call.1} parent=1 // pred_fallthru
      _
    // Predicated region
    $region18: #{tpu_custom_call.1} parent=1 // pred_check
      _
    $region19: #{tpu_custom_call.1} parent=1 // pred_check_branch
      %27 = sbr.rel (0) target = $region21
    $region20: #{tpu_custom_call.1} parent=1 // pred_region
      _
    $region21: #{tpu_custom_call.1} parent=1 // pred_fallthru
      _
    // Predicated region
    $region22: #{tpu_custom_call.1} parent=1 // pred_check
      _
    $region23: #{tpu_custom_call.1} parent=1 // pred_check_branch
      %29 = sbr.rel (0) target = $region25
    $region24: #{tpu_custom_call.1} parent=1 // pred_region
      _
    $region25: #{tpu_custom_call.1} parent=1 // pred_fallthru
      _
    // Predicated region
    $region26: #{tpu_custom_call.1} parent=1 // pred_check
      _
    $region27: #{tpu_custom_call.1} parent=1 // pred_check_branch
      %31 = sbr.rel (0) target = $region29
    $region28: #{tpu_custom_call.1} parent=1 // pred_region
      _
    $region29: #{tpu_custom_call.1} parent=1 // pred_fallthru
      _
    // Predicated region
    $region30: #{tpu_custom_call.1} parent=1 // pred_check
      _
    $region31: #{tpu_custom_call.1} parent=1 // pred_check_branch
      %33 = sbr.rel (0) target = $region33
    $region32: #{tpu_custom_call.1} parent=1 // pred_region
      _
    $region33: #{tpu_custom_call.1} parent=1 // pred_fallthru
      _
    // Predicated region
    $region34: #{tpu_custom_call.1} parent=1 // pred_check
      _
    $region35: #{tpu_custom_call.1} parent=1 // pred_check_branch
      %35 = sbr.rel (0) target = $region37
    $region36: #{tpu_custom_call.1} parent=1 // pred_region
      _
    $region37: #{tpu_custom_call.1} parent=1 // pred_fallthru
      _
    %v37 = vld [vmem:[%s0] sm:$0xff]
    %v38 = vpack.c.bf16 %v37, %v37
    %v39 = vld [vmem:[%s1] sm:$0xff]
    %v40 = vld [vmem:[%s2] sm:$0x3]
    %v42 = vlaneseq
    %v43 = vshrl.u32 %v42, 7
    %v44 = vsub.s32 0, %v43
    %v45 = vrot.slane %v40, %v44
    %v46 = vlaneseq
    %v47 = vshrl.u32 %v46, 7
    %v48 = vsub.s32 1, %v47
    %v49 = vrot.slane %v40, %v48
    %v53 = vunpack.c.l.b16 %v39
    %v54 = vunpack.c.h.b16 %v39
    %v55 = vpack.c.b16 %v53, %v53
    %v56 = vpack.c.b16 %v54, %v54
    %vm57 = vcmask 64512
    %v59 = vsel %vm57, %v38, 0
    %vm61 = vcmask 1043456
    %v63 = vsel %vm61, %v55, 0
    %v66 = vsel %vm61, %v56, 0
    %68 = vmatprep.subr.bf16.mxu0 %v66
    %69 = vmatpush1.bf16.msra.mxu0 %v63
    %70 = vmatprep.subr.bf16.mxu0 0
    %71 = vmatpush1.bf16.msra.mxu0 0
    %72 = vmatprep.subr.bf16.mxu0 0
    %73 = vmatpush1.bf16.msra.mxu0 0
    %74 = vmatprep.subr.bf16.mxu0 0
    %75 = vmatpush1.bf16.msra.mxu0 0
    %76 = vmatprep.subr.bf16.mxu0 0
    %77 = vmatpush1.bf16.msra.mxu0 0
    %78 = vmatprep.subr.bf16.mxu0 0
    %79 = vmatpush1.bf16.msra.mxu0 0
    %80 = vmatprep.subr.bf16.mxu0 0
    %81 = vmatpush1.bf16.msra.mxu0 0
    %82 = vmatprep.subr.bf16.mxu0 0
    %83 = vmatpush1.bf16.msra.mxu0 0
    %84 = vmatprep.subr.bf16.mxu0 0
    %85 = vmatpush1.bf16.msra.mxu0 0
    %86 = vmatprep.subr.bf16.mxu0 0
    %87 = vmatpush1.bf16.msra.mxu0 0
    %88 = vmatprep.subr.bf16.mxu0 0
    %89 = vmatpush1.bf16.msra.mxu0 0
    %90 = vmatprep.subr.bf16.mxu0 0
    %91 = vmatpush1.bf16.msra.mxu0 0
    %92 = vmatprep.subr.bf16.mxu0 0
    %93 = vmatpush1.bf16.msra.mxu0 0
    %94 = vmatprep.subr.bf16.mxu0 0
    %95 = vmatpush1.bf16.msra.mxu0 0
    %96 = vmatprep.subr.bf16.mxu0 0
    %97 = vmatpush1.bf16.msra.mxu0 0
    %98 = vmatprep.subr.bf16.mxu0 0
    %99 = vmatpush1.bf16.msra.mxu0 0
    %100 = vmatprep.mubr.bf16.mxu0 0
    %101 = vmatmul.mubr.bf16.gmra.mrb[0].mxu0 %v59
    %v102 = vpop.f32.mrb[0].mxu0
    %v103 = vadd.f32 %v45, %v102
    %v104 = vpop.f32.mrb[0].mxu0
    %v105 = vadd.f32 %v49, %v104
    %v106 = vpop.f32.mrb[0].mxu0
    %v107 = vpop.f32.mrb[0].mxu0
    %108 = vdwg.mxu0
    %v109 = vtanh.pop %v103
    %v110 = vtanh.pop %v105
    %v111 = vpack.c.bf16 %v109, %v109
    %v112 = vpack.c.bf16 %v110, %v110
    %v113 = vld [vmem:[%s3] sm:$0xf]
    %v114 = vld [vmem:[%s3 + $0x4] sm:$0xf]
    %v115 = vld [vmem:[%s3 + $0x8] sm:$0xf]
    %v116 = vld [vmem:[%s3 + $0xc] sm:$0xf]
    %v117 = vld [vmem:[%s3 + $0x10] sm:$0xf]
    %v118 = vld [vmem:[%s3 + $0x14] sm:$0xf]
    %v119 = vld [vmem:[%s3 + $0x18] sm:$0xf]
    %v120 = vld [vmem:[%s3 + $0x1c] sm:$0xf]
    %v121 = vld [vmem:[%s3 + $0x20] sm:$0xf]
    %v122 = vld [vmem:[%s3 + $0x24] sm:$0xf]
    %v123 = vld [vmem:[%s3 + $0x28] sm:$0xf]
    %v124 = vld [vmem:[%s3 + $0x2c] sm:$0xf]
    %v125 = vld [vmem:[%s3 + $0x30] sm:$0xf]
    %v126 = vld [vmem:[%s3 + $0x34] sm:$0xf]
    %v127 = vld [vmem:[%s3 + $0x38] sm:$0xf]
    %v128 = vld [vmem:[%s3 + $0x3c] sm:$0xf]
    %v129 = vld [vmem:[%s3 + $0x40] sm:$0xf]
    %v130 = vld [vmem:[%s3 + $0x44] sm:$0xf]
    %v131 = vld [vmem:[%s3 + $0x48] sm:$0xf]
    %v132 = vld [vmem:[%s3 + $0x4c] sm:$0xf]
    %v133 = vld [vmem:[%s3 + $0x50] sm:$0xf]
    %v134 = vld [vmem:[%s3 + $0x54] sm:$0xf]
    %v135 = vld [vmem:[%s3 + $0x58] sm:$0xf]
    %v136 = vld [vmem:[%s3 + $0x5c] sm:$0xf]
    %v137 = vld [vmem:[%s3 + $0x60] sm:$0xf]
    %v138 = vld [vmem:[%s3 + $0x64] sm:$0xf]
    %v139 = vld [vmem:[%s3 + $0x68] sm:$0xf]
    %v140 = vld [vmem:[%s3 + $0x6c] sm:$0xf]
    %v141 = vld [vmem:[%s3 + $0x70] sm:$0xf]
    %v142 = vld [vmem:[%s3 + $0x74] sm:$0xf]
    %v143 = vld [vmem:[%s3 + $0x78] sm:$0xf]
    %v144 = vld [vmem:[%s3 + $0x7c] sm:$0xf]
    %v145 = vld [vmem:[%s4] sm:$0x1]
    %v147 = vlaneseq
    %v148 = vshrl.u32 %v147, 7
    %v149 = vsub.s32 0, %v148
    %v150 = vrot.slane %v145, %v149
    %v184 = vunpack.c.l.b16 %v113
    %v185 = vunpack.c.l.b16 %v114
    %v186 = vunpack.c.l.b16 %v115
    %v187 = vunpack.c.l.b16 %v116
    %v188 = vunpack.c.l.b16 %v117
    %v189 = vunpack.c.l.b16 %v118
    %v190 = vunpack.c.l.b16 %v119
    %v191 = vunpack.c.l.b16 %v120
    %v192 = vunpack.c.l.b16 %v121
    %v193 = vunpack.c.l.b16 %v122
    %v194 = vunpack.c.l.b16 %v123
    %v195 = vunpack.c.l.b16 %v124
    %v196 = vunpack.c.l.b16 %v125
    %v197 = vunpack.c.l.b16 %v126
    %v198 = vunpack.c.l.b16 %v127
    %v199 = vunpack.c.l.b16 %v128
    %v200 = vunpack.c.l.b16 %v129
    %v201 = vunpack.c.l.b16 %v130
    %v202 = vunpack.c.l.b16 %v131
    %v203 = vunpack.c.l.b16 %v132
    %v204 = vunpack.c.l.b16 %v133
    %v205 = vunpack.c.l.b16 %v134
    %v206 = vunpack.c.l.b16 %v135
    %v207 = vunpack.c.l.b16 %v136
    %v208 = vunpack.c.l.b16 %v137
    %v209 = vunpack.c.l.b16 %v138
    %v210 = vunpack.c.l.b16 %v139
    %v211 = vunpack.c.l.b16 %v140
    %v212 = vunpack.c.l.b16 %v141
    %v213 = vunpack.c.l.b16 %v142
    %v214 = vunpack.c.l.b16 %v143
    %v215 = vunpack.c.l.b16 %v144
    %v216 = vpack.c.b16 %v185, %v184
    %v217 = vpack.c.b16 %v187, %v186
    %v218 = vpack.c.b16 %v189, %v188
    %v219 = vpack.c.b16 %v191, %v190
    %v220 = vpack.c.b16 %v193, %v192
    %v221 = vpack.c.b16 %v195, %v194
    %v222 = vpack.c.b16 %v197, %v196
    %v223 = vpack.c.b16 %v199, %v198
    %v224 = vpack.c.b16 %v201, %v200
    %v225 = vpack.c.b16 %v203, %v202
    %v226 = vpack.c.b16 %v205, %v204
    %v227 = vpack.c.b16 %v207, %v206
    %v228 = vpack.c.b16 %v209, %v208
    %v229 = vpack.c.b16 %v211, %v210
    %v230 = vpack.c.b16 %v213, %v212
    %v231 = vpack.c.b16 %v215, %v214
    %248 = vmatprep.subr.bf16.mxu0 0
    %249 = vmatpush1.bf16.msra.mxu0 %v216
    %250 = vmatprep.subr.bf16.mxu0 0
    %251 = vmatpush1.bf16.msra.mxu0 %v217
    %252 = vmatprep.subr.bf16.mxu0 0
    %253 = vmatpush1.bf16.msra.mxu0 %v218
    %254 = vmatprep.subr.bf16.mxu0 0
    %255 = vmatpush1.bf16.msra.mxu0 %v219
    %256 = vmatprep.subr.bf16.mxu0 0
    %257 = vmatpush1.bf16.msra.mxu0 %v220
    %258 = vmatprep.subr.bf16.mxu0 0
    %259 = vmatpush1.bf16.msra.mxu0 %v221
    %260 = vmatprep.subr.bf16.mxu0 0
    %261 = vmatpush1.bf16.msra.mxu0 %v222
    %262 = vmatprep.subr.bf16.mxu0 0
    %263 = vmatpush1.bf16.msra.mxu0 %v223
    %264 = vmatprep.subr.bf16.mxu0 0
    %265 = vmatpush1.bf16.msra.mxu0 %v224
    %266 = vmatprep.subr.bf16.mxu0 0
    %267 = vmatpush1.bf16.msra.mxu0 %v225
    %268 = vmatprep.subr.bf16.mxu0 0
    %269 = vmatpush1.bf16.msra.mxu0 %v226
    %270 = vmatprep.subr.bf16.mxu0 0
    %271 = vmatpush1.bf16.msra.mxu0 %v227
    %272 = vmatprep.subr.bf16.mxu0 0
    %273 = vmatpush1.bf16.msra.mxu0 %v228
    %274 = vmatprep.subr.bf16.mxu0 0
    %275 = vmatpush1.bf16.msra.mxu0 %v229
    %276 = vmatprep.subr.bf16.mxu0 0
    %277 = vmatpush1.bf16.msra.mxu0 %v230
    %278 = vmatprep.subr.bf16.mxu0 0
    %279 = vmatpush1.bf16.msra.mxu0 %v231
    %280 = vmatprep.mubr.bf16.mxu0 %v112
    %281 = vmatmul.mubr.bf16.gmra.mrb[0].mxu0 %v111
    %v282 = vpop.f32.mrb[0].mxu0
    %v283 = vadd.f32 %v150, %v282
    %v284 = vpop.f32.mrb[0].mxu0
    %v285 = vpop.f32.mrb[0].mxu0
    %v286 = vpop.f32.mrb[0].mxu0
    %287 = vdwg.mxu0
    %vm288 = vcmask 916480
    %289 = vst.msk [vmem:[#allocation2] sm:$0xff] %vm288, %v283
    %v290 = vld [vmem:[%s5] sm:$0xff]
    %v291 = vld [vmem:[%s6] sm:$0x3]
    %v293 = vlaneseq
    %v294 = vshrl.u32 %v293, 7
    %v295 = vsub.s32 0, %v294
    %v296 = vrot.slane %v291, %v295
    %v297 = vlaneseq
    %v298 = vshrl.u32 %v297, 7
    %v299 = vsub.s32 1, %v298
    %v300 = vrot.slane %v291, %v299
    %v304 = vunpack.c.l.b16 %v290
    %v305 = vunpack.c.h.b16 %v290
    %v306 = vpack.c.b16 %v304, %v304
    %v307 = vpack.c.b16 %v305, %v305
    %v309 = vsel %vm61, %v306, 0
    %v312 = vsel %vm61, %v307, 0
    %314 = vmatprep.subr.bf16.mxu0 %v312
    %315 = vmatpush1.bf16.msra.mxu0 %v309
    %316 = vmatprep.subr.bf16.mxu0 0
    %317 = vmatpush1.bf16.msra.mxu0 0
    %318 = vmatprep.subr.bf16.mxu0 0
    %319 = vmatpush1.bf16.msra.mxu0 0
    %320 = vmatprep.subr.bf16.mxu0 0
    %321 = vmatpush1.bf16.msra.mxu0 0
    %322 = vmatprep.subr.bf16.mxu0 0
    %323 = vmatpush1.bf16.msra.mxu0 0
    %324 = vmatprep.subr.bf16.mxu0 0
    %325 = vmatpush1.bf16.msra.mxu0 0
    %326 = vmatprep.subr.bf16.mxu0 0
    %327 = vmatpush1.bf16.msra.mxu0 0
    %328 = vmatprep.subr.bf16.mxu0 0
    %329 = vmatpush1.bf16.msra.mxu0 0
    %330 = vmatprep.subr.bf16.mxu0 0
    %331 = vmatpush1.bf16.msra.mxu0 0
    %332 = vmatprep.subr.bf16.mxu0 0
    %333 = vmatpush1.bf16.msra.mxu0 0
    %334 = vmatprep.subr.bf16.mxu0 0
    %335 = vmatpush1.bf16.msra.mxu0 0
    %336 = vmatprep.subr.bf16.mxu0 0
    %337 = vmatpush1.bf16.msra.mxu0 0
    %338 = vmatprep.subr.bf16.mxu0 0
    %339 = vmatpush1.bf16.msra.mxu0 0
    %340 = vmatprep.subr.bf16.mxu0 0
    %341 = vmatpush1.bf16.msra.mxu0 0
    %342 = vmatprep.subr.bf16.mxu0 0
    %343 = vmatpush1.bf16.msra.mxu0 0
    %344 = vmatprep.subr.bf16.mxu0 0
    %345 = vmatpush1.bf16.msra.mxu0 0
    %346 = vmatprep.mubr.bf16.mxu0 0
    %347 = vmatmul.mubr.bf16.gmra.mrb[0].mxu0 %v59
    %v348 = vpop.f32.mrb[0].mxu0
    %v349 = vadd.f32 %v296, %v348
    %v350 = vpop.f32.mrb[0].mxu0
    %v351 = vadd.f32 %v300, %v350
    %v352 = vpop.f32.mrb[0].mxu0
    %v353 = vpop.f32.mrb[0].mxu0
    %354 = vdwg.mxu0
    %v355 = vtanh.pop %v349
    %v356 = vtanh.pop %v351
    %v357 = vpack.c.bf16 %v355, %v355
    %v358 = vpack.c.bf16 %v356, %v356
    %v359 = vld [vmem:[%s7] sm:$0xf]
    %v360 = vld [vmem:[%s7 + $0x4] sm:$0xf]
    %v361 = vld [vmem:[%s7 + $0x8] sm:$0xf]
    %v362 = vld [vmem:[%s7 + $0xc] sm:$0xf]
    %v363 = vld [vmem:[%s7 + $0x10] sm:$0xf]
    %v364 = vld [vmem:[%s7 + $0x14] sm:$0xf]
    %v365 = vld [vmem:[%s7 + $0x18] sm:$0xf]
    %v366 = vld [vmem:[%s7 + $0x1c] sm:$0xf]
    %v367 = vld [vmem:[%s7 + $0x20] sm:$0xf]
    %v368 = vld [vmem:[%s7 + $0x24] sm:$0xf]
    %v369 = vld [vmem:[%s7 + $0x28] sm:$0xf]
    %v370 = vld [vmem:[%s7 + $0x2c] sm:$0xf]
    %v371 = vld [vmem:[%s7 + $0x30] sm:$0xf]
    %v372 = vld [vmem:[%s7 + $0x34] sm:$0xf]
    %v373 = vld [vmem:[%s7 + $0x38] sm:$0xf]
    %v374 = vld [vmem:[%s7 + $0x3c] sm:$0xf]
    %v375 = vld [vmem:[%s7 + $0x40] sm:$0xf]
    %v376 = vld [vmem:[%s7 + $0x44] sm:$0xf]
    %v377 = vld [vmem:[%s7 + $0x48] sm:$0xf]
    %v378 = vld [vmem:[%s7 + $0x4c] sm:$0xf]
    %v379 = vld [vmem:[%s7 + $0x50] sm:$0xf]
    %v380 = vld [vmem:[%s7 + $0x54] sm:$0xf]
    %v381 = vld [vmem:[%s7 + $0x58] sm:$0xf]
    %v382 = vld [vmem:[%s7 + $0x5c] sm:$0xf]
    %v383 = vld [vmem:[%s7 + $0x60] sm:$0xf]
    %v384 = vld [vmem:[%s7 + $0x64] sm:$0xf]
    %v385 = vld [vmem:[%s7 + $0x68] sm:$0xf]
    %v386 = vld [vmem:[%s7 + $0x6c] sm:$0xf]
    %v387 = vld [vmem:[%s7 + $0x70] sm:$0xf]
    %v388 = vld [vmem:[%s7 + $0x74] sm:$0xf]
    %v389 = vld [vmem:[%s7 + $0x78] sm:$0xf]
    %v390 = vld [vmem:[%s7 + $0x7c] sm:$0xf]
    %v391 = vld [vmem:[%s8] sm:$0x1]
    %v393 = vlaneseq
    %v394 = vshrl.u32 %v393, 7
    %v395 = vsub.s32 0, %v394
    %v396 = vrot.slane %v391, %v395
    %v430 = vunpack.c.l.b16 %v359
    %v431 = vunpack.c.l.b16 %v360
    %v432 = vunpack.c.l.b16 %v361
    %v433 = vunpack.c.l.b16 %v362
    %v434 = vunpack.c.l.b16 %v363
    %v435 = vunpack.c.l.b16 %v364
    %v436 = vunpack.c.l.b16 %v365
    %v437 = vunpack.c.l.b16 %v366
    %v438 = vunpack.c.l.b16 %v367
    %v439 = vunpack.c.l.b16 %v368
    %v440 = vunpack.c.l.b16 %v369
    %v441 = vunpack.c.l.b16 %v370
    %v442 = vunpack.c.l.b16 %v371
    %v443 = vunpack.c.l.b16 %v372
    %v444 = vunpack.c.l.b16 %v373
    %v445 = vunpack.c.l.b16 %v374
    %v446 = vunpack.c.l.b16 %v375
    %v447 = vunpack.c.l.b16 %v376
    %v448 = vunpack.c.l.b16 %v377
    %v449 = vunpack.c.l.b16 %v378
    %v450 = vunpack.c.l.b16 %v379
    %v451 = vunpack.c.l.b16 %v380
    %v452 = vunpack.c.l.b16 %v381
    %v453 = vunpack.c.l.b16 %v382
    %v454 = vunpack.c.l.b16 %v383
    %v455 = vunpack.c.l.b16 %v384
    %v456 = vunpack.c.l.b16 %v385
    %v457 = vunpack.c.l.b16 %v386
    %v458 = vunpack.c.l.b16 %v387
    %v459 = vunpack.c.l.b16 %v388
    %v460 = vunpack.c.l.b16 %v389
    %v461 = vunpack.c.l.b16 %v390
    %v462 = vpack.c.b16 %v431, %v430
    %v463 = vpack.c.b16 %v433, %v432
    %v464 = vpack.c.b16 %v435, %v434
    %v465 = vpack.c.b16 %v437, %v436
    %v466 = vpack.c.b16 %v439, %v438
    %v467 = vpack.c.b16 %v441, %v440
    %v468 = vpack.c.b16 %v443, %v442
    %v469 = vpack.c.b16 %v445, %v444
    %v470 = vpack.c.b16 %v447, %v446
    %v471 = vpack.c.b16 %v449, %v448
    %v472 = vpack.c.b16 %v451, %v450
    %v473 = vpack.c.b16 %v453, %v452
    %v474 = vpack.c.b16 %v455, %v454
    %v475 = vpack.c.b16 %v457, %v456
    %v476 = vpack.c.b16 %v459, %v458
    %v477 = vpack.c.b16 %v461, %v460
    %494 = vmatprep.subr.bf16.mxu0 0
    %495 = vmatpush1.bf16.msra.mxu0 %v462
    %496 = vmatprep.subr.bf16.mxu0 0
    %497 = vmatpush1.bf16.msra.mxu0 %v463
    %498 = vmatprep.subr.bf16.mxu0 0
    %499 = vmatpush1.bf16.msra.mxu0 %v464
    %500 = vmatprep.subr.bf16.mxu0 0
    %501 = vmatpush1.bf16.msra.mxu0 %v465
    %502 = vmatprep.subr.bf16.mxu0 0
    %503 = vmatpush1.bf16.msra.mxu0 %v466
    %504 = vmatprep.subr.bf16.mxu0 0
    %505 = vmatpush1.bf16.msra.mxu0 %v467
    %506 = vmatprep.subr.bf16.mxu0 0
    %507 = vmatpush1.bf16.msra.mxu0 %v468
    %508 = vmatprep.subr.bf16.mxu0 0
    %509 = vmatpush1.bf16.msra.mxu0 %v469
    %510 = vmatprep.subr.bf16.mxu0 0
    %511 = vmatpush1.bf16.msra.mxu0 %v470
    %512 = vmatprep.subr.bf16.mxu0 0
    %513 = vmatpush1.bf16.msra.mxu0 %v471
    %514 = vmatprep.subr.bf16.mxu0 0
    %515 = vmatpush1.bf16.msra.mxu0 %v472
    %516 = vmatprep.subr.bf16.mxu0 0
    %517 = vmatpush1.bf16.msra.mxu0 %v473
    %518 = vmatprep.subr.bf16.mxu0 0
    %519 = vmatpush1.bf16.msra.mxu0 %v474
    %520 = vmatprep.subr.bf16.mxu0 0
    %521 = vmatpush1.bf16.msra.mxu0 %v475
    %522 = vmatprep.subr.bf16.mxu0 0
    %523 = vmatpush1.bf16.msra.mxu0 %v476
    %524 = vmatprep.subr.bf16.mxu0 0
    %525 = vmatpush1.bf16.msra.mxu0 %v477
    %526 = vmatprep.mubr.bf16.mxu0 %v358
    %527 = vmatmul.mubr.bf16.gmra.mrb[0].mxu0 %v357
    %v528 = vpop.f32.mrb[0].mxu0
    %v529 = vadd.f32 %v396, %v528
    %v530 = vpop.f32.mrb[0].mxu0
    %v531 = vpop.f32.mrb[0].mxu0
    %v532 = vpop.f32.mrb[0].mxu0
    %533 = vdwg.mxu0
    %vm534 = vcmask 523264
    %535 = vst.msk [vmem:[#allocation4] sm:$0xff] %vm534, %v529
    // Predicated region
    $region38: #{tpu_custom_call.1} parent=1 // pred_check
      _
    $region39: #{tpu_custom_call.1} parent=1 // pred_check_branch
      %537 = sbr.rel (0) target = $region41
    $region40: #{tpu_custom_call.1} parent=1 // pred_region
      %s539 = ssub.s32 128, 128
      %540 = vsyncadd [#allocation3], %s539
      %s542 = sshll.u32 [#allocation2], 4
      %s543 = int_to_ptr.vmem [resolvable:$true] %s542
      %545 = dma.vmem_to_hbm [thread:$0]  %s543, 128, %s9, [#allocation3]
    $region41: #{tpu_custom_call.1} parent=1 // pred_fallthru
      _
    // Predicated region
    $region42: #{tpu_custom_call.1} parent=1 // pred_check
      _
    $region43: #{tpu_custom_call.1} parent=1 // pred_check_branch
      %547 = sbr.rel (0) target = $region45
    $region44: #{tpu_custom_call.1} parent=1 // pred_region
      %s549 = ssub.s32 128, 128
      %550 = vsyncadd [#allocation5], %s549
      %s552 = sshll.u32 [#allocation4], 4
      %s553 = int_to_ptr.vmem [resolvable:$true] %s552
      %555 = dma.vmem_to_hbm [thread:$0]  %s553, 128, %s10, [#allocation5]
    $region45: #{tpu_custom_call.1} parent=1 // pred_fallthru
      _
    // Predicated region
    $region46: #{tpu_custom_call.1} parent=1 // pred_check
      _
    $region47: #{tpu_custom_call.1} parent=1 // pred_check_branch
      %557 = sbr.rel (0) target = $region49
    $region48: #{tpu_custom_call.1} parent=1 // pred_region
      %558 = dma.done [#allocation3], 128
    $region49: #{tpu_custom_call.1} parent=1 // pred_fallthru
      _
    // Predicated region
    $region50: #{tpu_custom_call.1} parent=1 // pred_check
      _
    $region51: #{tpu_custom_call.1} parent=1 // pred_check_branch
      %560 = sbr.rel (0) target = $region53
    $region52: #{tpu_custom_call.1} parent=1 // pred_region
      %561 = dma.done [#allocation5], 128
    $region53: #{tpu_custom_call.1} parent=1 // pred_fallthru
      _
    %562 = vsyncpa [#allocation3], 1
    %563 = vsyncpa [#allocation5], 1

</llo_original>
